<compile_context>
chip_gen: v7x
topology: tpu7x:2x2x1
jax: 0.10.0
libtpu: 0.0.40
codegen_flags: <defaults>
</compile_context>

<pallas_src>
import functools

import jax
import jax.numpy as jnp
from jax.experimental import pallas as pl
from jax.experimental.pallas import tpu as pltpu


def _round_up(x: int, m: int) -> int:
    return (x + m - 1) // m * m


def _mlp_kernel(x_ref, w1_ref, b1_ref, w2_ref, b2_ref, w3_ref, b3_ref, o_ref,
                *, isactiondiscrete: bool, n_actions: int):
    # One batch tile per grid step; weights are resident in VMEM (constant block index).
    x = x_ref[...]  # already bf16 (cast once in the wrapper)

    # bf16 MXU operands, f32 accumulation; elementwise path stays f32.
    h1 = jnp.dot(x, w1_ref[...], preferred_element_type=jnp.float32) + b1_ref[...]
    h1 = jax.nn.sigmoid(h1)

    h2 = jnp.dot(h1.astype(jnp.bfloat16), w2_ref[...],
                 preferred_element_type=jnp.float32) + b2_ref[...]
    h2 = jax.nn.sigmoid(h2)

    logits = jnp.dot(h2.astype(jnp.bfloat16), w3_ref[...],
                     preferred_element_type=jnp.float32) + b3_ref[...]

    if isactiondiscrete:
        # Lane-padded log-softmax: mask padded action lanes so they don't pollute the LSE.
        lane = jax.lax.broadcasted_iota(jnp.int32, logits.shape, 1)
        masked = jnp.where(lane < n_actions, logits, -jnp.inf)
        m = jnp.max(masked, axis=-1, keepdims=True)
        shifted = masked - m
        lse = jnp.log(jnp.sum(jnp.exp(shifted), axis=-1, keepdims=True))
        logits = shifted - lse

    # Store only the real action columns (narrow output -> ~32x less HBM writeback,
    # and the -inf in padded lanes of the discrete path never leaves the kernel).
    o_ref[...] = logits[:, :n_actions].astype(o_ref.dtype)


def agent_trpo_forward(states, params, *, isactiondiscrete=False):
    """states: [B, input_dim] float32 -> [B, n_actions] float32 (log-probs if discrete)."""
    w1, b1, w2, b2, w3, b3 = params
    B, D = states.shape
    H1 = w1.shape[1]
    H2 = w2.shape[1]
    A = w3.shape[1]

    # Lane-align hidden/output widths to 128 (full vregs / MXU passes inside the kernel).
    H1p = _round_up(H1, 128)
    H2p = _round_up(H2, 128)
    Ap = _round_up(A, 128)

    def pad2(a, rows, cols):
        return jnp.pad(a, ((0, rows - a.shape[0]), (0, cols - a.shape[1])))

    # Weights -> bf16 MXU operands (once, here); biases stay f32.
    w1p = pad2(w1, D, H1p).astype(jnp.bfloat16)
    w2p = pad2(w2, H1p, H2p).astype(jnp.bfloat16)
    w3p = pad2(w3, H2p, Ap).astype(jnp.bfloat16)
    b1p = pad2(b1, 1, H1p).astype(jnp.float32)
    b2p = pad2(b2, 1, H2p).astype(jnp.float32)
    b3p = pad2(b3, 1, Ap).astype(jnp.float32)

    # Batch tiling: pick a tile that (a) is a multiple of 16 (bf16 sublane tiling),
    # (b) caps the f32 (TB, 128) intermediates well under v5e's 16 MiB scoped VMEM,
    # (c) yields >=2 grid steps for large batches so v7x shards across both TCs,
    # (d) minimizes padding waste by balancing the steps.
    TB_MAX = 4096
    steps = pl.cdiv(B, TB_MAX)
    if B >= 256:
        steps = max(steps, 2)
    TB = _round_up(pl.cdiv(B, steps), 16)
    Bp = steps * TB
    grid = (steps,)

    # Stream bf16 inputs (halves input HBM traffic; MXU consumes bf16 anyway).
    xs = jnp.pad(states, ((0, Bp - B), (0, 0))).astype(jnp.bfloat16)

    kernel = functools.partial(_mlp_kernel,
                               isactiondiscrete=isactiondiscrete,
                               n_actions=A)

    def resident(shape):
        # Constant block index across the batch grid -> weights stay in VMEM.
        return pl.BlockSpec(shape, lambda i: (0, 0))

    flops = 2 * Bp * (D * H1p + H1p * H2p + H2p * Ap)
    transcendentals = Bp * (H1p + H2p)  # two sigmoid layers
    bytes_accessed = (xs.size * 2 + Bp * A * 4
                      + (w1p.size + w2p.size + w3p.size) * 2
                      + (b1p.size + b2p.size + b3p.size) * 4)

    out = pl.pallas_call(
        kernel,
        out_shape=jax.ShapeDtypeStruct((Bp, A), jnp.float32),
        grid=grid,
        in_specs=[pl.BlockSpec((TB, D), lambda i: (i, 0)),
                  resident(w1p.shape), resident(b1p.shape),
                  resident(w2p.shape), resident(b2p.shape),
                  resident(w3p.shape), resident(b3p.shape)],
        # Last dim A equals the full array dim -> legal narrow block; store slot is
        # nowhere near binding, so the masked vst is irrelevant vs the 32x byte saving.
        out_specs=pl.BlockSpec((TB, A), lambda i: (i, 0)),
        compiler_params=pltpu.CompilerParams(
            dimension_semantics=("parallel",)),
        cost_estimate=pl.CostEstimate(flops=flops,
                                      transcendentals=transcendentals,
                                      bytes_accessed=bytes_accessed),
    )(xs, w1p, b1p, w2p, b2p, w3p, b3p)

    return out[:B]


def init_params(key, input_dim, n_neurons, n_actions):
    """Deterministic init, PyTorch-Linear-style uniform(-1/sqrt(fan_in), 1/sqrt(fan_in)).
    Weights are stored as [in, out] (transposed vs torch)."""
    h1, h2 = n_neurons
    keys = jax.random.split(key, 6)

    def lin(kw, kb, fan_in, fan_out):
        bound = 1.0 / jnp.sqrt(float(fan_in))
        w = jax.random.uniform(kw, (fan_in, fan_out), jnp.float32, -bound, bound)
        b = jax.random.uniform(kb, (1, fan_out), jnp.float32, -bound, bound)
        return w, b

    w1, b1 = lin(keys[0], keys[1], input_dim, h1)
    w2, b2 = lin(keys[2], keys[3], h1, h2)
    w3, b3 = lin(keys[4], keys[5], h2, n_actions)
    return (w1, b1, w2, b2, w3, b3)


def reference_forward(states, params, *, isactiondiscrete=False):
    w1, b1, w2, b2, w3, b3 = params
    h1 = jax.nn.sigmoid(states @ w1 + b1)
    h2 = jax.nn.sigmoid(h1 @ w2 + b2)
    logits = h2 @ w3 + b3
    if isactiondiscrete:
        logits = jax.nn.log_softmax(logits, axis=-1)
    return logits


if __name__ == "__main__":
    # TODO(synk): KANLinear branch (iskan=True) has no clean Pallas port here; only the
    # default MLP path used by AgentTRPO (iskan=False) is implemented.
    key = jax.random.PRNGKey(0)
    k_x, k_p = jax.random.split(key)

    batch = 2
    input_dim = 8            # state_shape.shape[0]
    n_neurons = [100, 100]   # TinyModel default; exercises the 100 -> 128 lane padding
    n_actions = 4

    states = jax.random.normal(k_x, (batch, input_dim), jnp.float32)
    params = init_params(k_p, input_dim, n_neurons, n_actions)

    # AgentTRPO default: isactiondiscrete=False -> raw outputs, no LogSoftmax.
    out = agent_trpo_forward(states, params, isactiondiscrete=False)
    out = jax.block_until_ready(out)

    ref = reference_forward(states, params, isactiondiscrete=False)
    assert out.shape == (batch, n_actions)
    # bf16 MXU operands (f32 accumulation) -> loosened tolerance vs the f32 reference.
    assert jnp.allclose(out, ref, atol=2e-2, rtol=2e-2)

    # Also exercise the discrete (log-softmax) path to cover isactiondiscrete=True.
    out_d = jax.block_until_ready(
        agent_trpo_forward(states, params, isactiondiscrete=True))
    ref_d = reference_forward(states, params, isactiondiscrete=True)
    assert out_d.shape == (batch, n_actions)
    assert jnp.isfinite(out_d).all()
    assert jnp.allclose(out_d, ref_d, atol=2e-2, rtol=2e-2)

    print("KERNEL_OK")
</pallas_src>

<mosaic_0001>
module attributes {stable_mosaic.version = 11 : i64} {
  func.func @_mlp_kernel(%arg0: i32, %arg1: memref<16x8xbf16, #tpu.memory_space<vmem>>, %arg2: memref<8x128xbf16, #tpu.memory_space<vmem>>, %arg3: memref<1x128xf32, #tpu.memory_space<vmem>>, %arg4: memref<128x128xbf16, #tpu.memory_space<vmem>>, %arg5: memref<1x128xf32, #tpu.memory_space<vmem>>, %arg6: memref<128x128xbf16, #tpu.memory_space<vmem>>, %arg7: memref<1x128xf32, #tpu.memory_space<vmem>>, %arg8: memref<16x4xf32, #tpu.memory_space<vmem>>) attributes {dimension_semantics = [#tpu.dimension_semantics<parallel>], iteration_bounds = array<i64: 1>, scalar_prefetch = 0 : i64, scratch_operands = 0 : i64, tpu.core_type = #tpu.core_type<tc>, window_params = [{transform_indices = @transform_0, window_bounds = array<i64: 16, 8>}, {pipeline_mode = #tpu.pipeline_mode<synchronous>, transform_indices = @transform_1, window_bounds = array<i64: 8, 128>}, {pipeline_mode = #tpu.pipeline_mode<synchronous>, transform_indices = @transform_2, window_bounds = array<i64: 1, 128>}, {pipeline_mode = #tpu.pipeline_mode<synchronous>, transform_indices = @transform_3, window_bounds = array<i64: 128, 128>}, {pipeline_mode = #tpu.pipeline_mode<synchronous>, transform_indices = @transform_4, window_bounds = array<i64: 1, 128>}, {pipeline_mode = #tpu.pipeline_mode<synchronous>, transform_indices = @transform_5, window_bounds = array<i64: 128, 128>}, {pipeline_mode = #tpu.pipeline_mode<synchronous>, transform_indices = @transform_6, window_bounds = array<i64: 1, 128>}, {transform_indices = @transform_7, window_bounds = array<i64: 16, 4>}]} {
    %c0 = arith.constant 0 : index
    %c0_0 = arith.constant 0 : index
    %0 = vector.load %arg1[%c0, %c0_0] : memref<16x8xbf16, #tpu.memory_space<vmem>>, vector<16x8xbf16>
    %c0_1 = arith.constant 0 : index
    %c0_2 = arith.constant 0 : index
    %1 = vector.load %arg2[%c0_1, %c0_2] : memref<8x128xbf16, #tpu.memory_space<vmem>>, vector<8x128xbf16>
    %cst = arith.constant dense<0.000000e+00> : vector<16x128xf32>
    %2 = tpu.matmul %0, %1, %cst {dimension_numbers = #tpu.dot_dimension_numbers<[1], [0], [0], [1], [0, 0, 1, 1], [], []>} : vector<16x8xbf16>, vector<8x128xbf16>, vector<16x128xf32> -> vector<16x128xf32>
    %c0_3 = arith.constant 0 : index
    %c0_4 = arith.constant 0 : index
    %3 = vector.load %arg3[%c0_3, %c0_4] : memref<1x128xf32, #tpu.memory_space<vmem>>, vector<1x128xf32>
    %4 = vector.broadcast %3 : vector<1x128xf32> to vector<16x128xf32>
    %5 = arith.addf %2, %4 : vector<16x128xf32>
    %6 = arith.negf %5 : vector<16x128xf32>
    %7 = math.exp %6 : vector<16x128xf32>
    %cst_5 = arith.constant 1.000000e+00 : f32
    %8 = vector.broadcast %cst_5 : f32 to vector<16x128xf32>
    %9 = arith.addf %8, %7 : vector<16x128xf32>
    %10 = arith.divf %8, %9 : vector<16x128xf32>
    %11 = arith.truncf %10 : vector<16x128xf32> to vector<16x128xbf16>
    %c0_6 = arith.constant 0 : index
    %c0_7 = arith.constant 0 : index
    %12 = vector.load %arg4[%c0_6, %c0_7] : memref<128x128xbf16, #tpu.memory_space<vmem>>, vector<128x128xbf16>
    %cst_8 = arith.constant dense<0.000000e+00> : vector<16x128xf32>
    %13 = tpu.matmul %11, %12, %cst_8 {dimension_numbers = #tpu.dot_dimension_numbers<[1], [0], [0], [1], [0, 0, 1, 1], [], []>} : vector<16x128xbf16>, vector<128x128xbf16>, vector<16x128xf32> -> vector<16x128xf32>
    %c0_9 = arith.constant 0 : index
    %c0_10 = arith.constant 0 : index
    %14 = vector.load %arg5[%c0_9, %c0_10] : memref<1x128xf32, #tpu.memory_space<vmem>>, vector<1x128xf32>
    %15 = vector.broadcast %14 : vector<1x128xf32> to vector<16x128xf32>
    %16 = arith.addf %13, %15 : vector<16x128xf32>
    %17 = arith.negf %16 : vector<16x128xf32>
    %18 = math.exp %17 : vector<16x128xf32>
    %cst_11 = arith.constant 1.000000e+00 : f32
    %19 = vector.broadcast %cst_11 : f32 to vector<16x128xf32>
    %20 = arith.addf %19, %18 : vector<16x128xf32>
    %21 = arith.divf %19, %20 : vector<16x128xf32>
    %22 = arith.truncf %21 : vector<16x128xf32> to vector<16x128xbf16>
    %c0_12 = arith.constant 0 : index
    %c0_13 = arith.constant 0 : index
    %23 = vector.load %arg6[%c0_12, %c0_13] : memref<128x128xbf16, #tpu.memory_space<vmem>>, vector<128x128xbf16>
    %cst_14 = arith.constant dense<0.000000e+00> : vector<16x128xf32>
    %24 = tpu.matmul %22, %23, %cst_14 {dimension_numbers = #tpu.dot_dimension_numbers<[1], [0], [0], [1], [0, 0, 1, 1], [], []>} : vector<16x128xbf16>, vector<128x128xbf16>, vector<16x128xf32> -> vector<16x128xf32>
    %c0_15 = arith.constant 0 : index
    %c0_16 = arith.constant 0 : index
    %25 = vector.load %arg7[%c0_15, %c0_16] : memref<1x128xf32, #tpu.memory_space<vmem>>, vector<1x128xf32>
    %26 = vector.broadcast %25 : vector<1x128xf32> to vector<16x128xf32>
    %27 = arith.addf %24, %26 : vector<16x128xf32>
    %28 = vector.extract_strided_slice %27 {offsets = [0, 0], sizes = [16, 4], strides = [1, 1]} : vector<16x128xf32> to vector<16x4xf32>
    %c0_17 = arith.constant 0 : index
    %c0_18 = arith.constant 0 : index
    %29 = vector.load %arg8[%c0_17, %c0_18] : memref<16x4xf32, #tpu.memory_space<vmem>>, vector<16x4xf32>
    tpu.vector_store %arg8[%c0_17, %c0_18], %28 {strides = array<i32>} : memref<16x4xf32, #tpu.memory_space<vmem>>, vector<16x4xf32>,
    return
  }
  func.func @transform_0(%arg0: i32) -> (i32, i32) {
    %c0_i32 = arith.constant 0 : i32
    %c0_i32_0 = arith.constant 0 : i32
    return %arg0, %c0_i32 : i32, i32
  }
  func.func @transform_1(%arg0: i32) -> (i32, i32) {
    %c0_i32 = arith.constant 0 : i32
    %c0_i32_0 = arith.constant 0 : i32
    %c0_i32_1 = arith.constant 0 : i32
    return %c0_i32, %c0_i32_0 : i32, i32
  }
  func.func @transform_2(%arg0: i32) -> (i32, i32) {
    %c0_i32 = arith.constant 0 : i32
    %c0_i32_0 = arith.constant 0 : i32
    %c0_i32_1 = arith.constant 0 : i32
    return %c0_i32, %c0_i32_0 : i32, i32
  }
  func.func @transform_3(%arg0: i32) -> (i32, i32) {
    %c0_i32 = arith.constant 0 : i32
    %c0_i32_0 = arith.constant 0 : i32
    %c0_i32_1 = arith.constant 0 : i32
    return %c0_i32, %c0_i32_0 : i32, i32
  }
  func.func @transform_4(%arg0: i32) -> (i32, i32) {
    %c0_i32 = arith.constant 0 : i32
    %c0_i32_0 = arith.constant 0 : i32
    %c0_i32_1 = arith.constant 0 : i32
    return %c0_i32, %c0_i32_0 : i32, i32
  }
  func.func @transform_5(%arg0: i32) -> (i32, i32) {
    %c0_i32 = arith.constant 0 : i32
    %c0_i32_0 = arith.constant 0 : i32
    %c0_i32_1 = arith.constant 0 : i32
    return %c0_i32, %c0_i32_0 : i32, i32
  }
  func.func @transform_6(%arg0: i32) -> (i32, i32) {
    %c0_i32 = arith.constant 0 : i32
    %c0_i32_0 = arith.constant 0 : i32
    %c0_i32_1 = arith.constant 0 : i32
    return %c0_i32, %c0_i32_0 : i32, i32
  }
  func.func @transform_7(%arg0: i32) -> (i32, i32) {
    %c0_i32 = arith.constant 0 : i32
    %c0_i32_0 = arith.constant 0 : i32
    return %arg0, %c0_i32 : i32, i32
  }
}

</mosaic_0001>

<llo_original>
// kernel: tpu_custom_call.1
$region0: #{tpu_custom_call.1}
  #allocation0 [shape = 'u32[]', space=smem, size = 0x4, offset = 0x4, fixed_abs, tag = 'smem constant byte address 0x4 - core index']
  #allocation1 [shape = 'u32[144,128]{1,0:T(1,128)}', space=vmem, size = 0x12000, scoped, tag = 'internal scratch']
  %s0 = inlined_call_operand.vmem [shape: bf16[16,8], index: 0, kind: input, shape index: {}]
  %s1 = inlined_call_operand.vmem [shape: bf16[8,128], index: 1, kind: input, shape index: {}]
  %s2 = inlined_call_operand.vmem [shape: f32[1,128], index: 2, kind: input, shape index: {}]
  %s3 = inlined_call_operand.hbm [shape: bf16[128,128], index: 3, kind: input, shape index: {}]
  %s4 = inlined_call_operand.vmem [shape: f32[1,128], index: 4, kind: input, shape index: {}]
  %s5 = inlined_call_operand.hbm [shape: bf16[128,128], index: 5, kind: input, shape index: {}]
  %s6 = inlined_call_operand.vmem [shape: f32[1,128], index: 6, kind: input, shape index: {}]
  %s7 = inlined_call_operand.vmem [shape: f32[16,4], index: 7, kind: output, shape index: {}]
  %s8 = sld [smem:[#allocation0]]
  $region46: #{tpu_custom_call.1} parent=0
    _
  %s10 = ssub.s32 1, %s8
  %s11 = scalar_select 0, %s10, %s8
  $region1: #{tpu_custom_call.1} parent=0
    #allocation2 [shape = 'u8[32768]{0}', space=vmem, size = 0x8000, scoped, tag = 'input window, operand 3, single buffered']
    #allocation3 [shape = 's32[1]{0}', space=sflag, size = 0x4, scoped, tag = 'scoped memory for tpu_custom_call.1']
    #allocation4 [shape = 'u8[32768]{0}', space=vmem, size = 0x8000, scoped, tag = 'input window, operand 5, single buffered']
    #allocation5 [shape = 's32[1]{0}', space=sflag, size = 0x4, scoped, tag = 'scoped memory for tpu_custom_call.1']
    %12 = vsyncpa [#allocation3], 0
    %13 = vsyncpa [#allocation5], 0
    // Predicated region
    $region2: #{tpu_custom_call.1} parent=1 // pred_check
      _
    $region3: #{tpu_custom_call.1} parent=1 // pred_check_branch
      %15 = sbr.rel (0) target = $region5
    $region4: #{tpu_custom_call.1} parent=1 // pred_region
      _
    $region5: #{tpu_custom_call.1} parent=1 // pred_fallthru
      _
    // Predicated region
    $region6: #{tpu_custom_call.1} parent=1 // pred_check
      _
    $region7: #{tpu_custom_call.1} parent=1 // pred_check_branch
      %17 = sbr.rel (0) target = $region9
    $region8: #{tpu_custom_call.1} parent=1 // pred_region
      _
    $region9: #{tpu_custom_call.1} parent=1 // pred_fallthru
      _
    // Predicated region
    $region10: #{tpu_custom_call.1} parent=1 // pred_check
      _
    $region11: #{tpu_custom_call.1} parent=1 // pred_check_branch
      %19 = sbr.rel (0) target = $region13
    $region12: #{tpu_custom_call.1} parent=1 // pred_region
      _
    $region13: #{tpu_custom_call.1} parent=1 // pred_fallthru
      _
    // Predicated region
    $region14: #{tpu_custom_call.1} parent=1 // pred_check
      _
    $region15: #{tpu_custom_call.1} parent=1 // pred_check_branch
      %21 = sbr.rel (0) target = $region17
    $region16: #{tpu_custom_call.1} parent=1 // pred_region
      %s23 = ssub.s32 1024, 1024
      %24 = vsyncadd [#allocation3], %s23
      %s25 = sshll.u32 [#allocation2], 4
      %s26 = int_to_ptr.vmem [resolvable:$true] %s25
      %31 = dma.hbm_to_vmem [thread:$0]  %s3, 1024, %s26, [#allocation3], 64, 64, 4
    $region17: #{tpu_custom_call.1} parent=1 // pred_fallthru
      _
    // Predicated region
    $region18: #{tpu_custom_call.1} parent=1 // pred_check
      _
    $region19: #{tpu_custom_call.1} parent=1 // pred_check_branch
      %33 = sbr.rel (0) target = $region21
    $region20: #{tpu_custom_call.1} parent=1 // pred_region
      _
    $region21: #{tpu_custom_call.1} parent=1 // pred_fallthru
      _
    // Predicated region
    $region22: #{tpu_custom_call.1} parent=1 // pred_check
      _
    $region23: #{tpu_custom_call.1} parent=1 // pred_check_branch
      %35 = sbr.rel (0) target = $region25
    $region24: #{tpu_custom_call.1} parent=1 // pred_region
      %s37 = ssub.s32 1024, 1024
      %38 = vsyncadd [#allocation5], %s37
      %s39 = sshll.u32 [#allocation4], 4
      %s40 = int_to_ptr.vmem [resolvable:$true] %s39
      %45 = dma.hbm_to_vmem [thread:$0]  %s5, 1024, %s40, [#allocation5], 64, 64, 4
    $region25: #{tpu_custom_call.1} parent=1 // pred_fallthru
      _
    // Predicated region
    $region26: #{tpu_custom_call.1} parent=1 // pred_check
      _
    $region27: #{tpu_custom_call.1} parent=1 // pred_check_branch
      %47 = sbr.rel (0) target = $region29
    $region28: #{tpu_custom_call.1} parent=1 // pred_region
      _
    $region29: #{tpu_custom_call.1} parent=1 // pred_fallthru
      _
    // Predicated region
    $region30: #{tpu_custom_call.1} parent=1 // pred_check
      _
    $region31: #{tpu_custom_call.1} parent=1 // pred_check_branch
      %49 = sbr.rel (0) target = $region33
    $region32: #{tpu_custom_call.1} parent=1 // pred_region
      %50 = dma.done [#allocation3], 1024
    $region33: #{tpu_custom_call.1} parent=1 // pred_fallthru
      _
    // Predicated region
    $region34: #{tpu_custom_call.1} parent=1 // pred_check
      _
    $region35: #{tpu_custom_call.1} parent=1 // pred_check_branch
      %52 = sbr.rel (0) target = $region37
    $region36: #{tpu_custom_call.1} parent=1 // pred_region
      %53 = dma.done [#allocation5], 1024
    $region37: #{tpu_custom_call.1} parent=1 // pred_fallthru
      _
    %v55 = vld [vmem:[%s0] sm:$0xf]
    %v56 = vld [vmem:[%s0 + $0x4] sm:$0xf]
    %v57 = vld [vmem:[%s1] sm:$0xf]
    %v58 = vld [vmem:[%s2] sm:$0x1]
    %v60 = vlaneseq
    %v61 = vshrl.u32 %v60, 7
    %v62 = vsub.s32 0, %v61
    %v63 = vrot.slane %v58, %v62
    %v67 = vunpack.c.l.b16 %v55
    %v68 = vunpack.c.l.b16 %v56
    %v69 = vpack.c.b16 %v68, %v67
    %vm70 = vcmask 64512
    %v72 = vsel %vm70, %v69, 0
    %vm74 = vcmask 1043456
    %v76 = vsel %vm74, %v57, 0
    %78 = vmatprep.subr.bf16.mxu0 0
    %79 = vmatpush1.bf16.msra.mxu0 %v76
    %80 = vmatprep.subr.bf16.mxu0 0
    %81 = vmatpush1.bf16.msra.mxu0 0
    %82 = vmatprep.subr.bf16.mxu0 0
    %83 = vmatpush1.bf16.msra.mxu0 0
    %84 = vmatprep.subr.bf16.mxu0 0
    %85 = vmatpush1.bf16.msra.mxu0 0
    %86 = vmatprep.subr.bf16.mxu0 0
    %87 = vmatpush1.bf16.msra.mxu0 0
    %88 = vmatprep.subr.bf16.mxu0 0
    %89 = vmatpush1.bf16.msra.mxu0 0
    %90 = vmatprep.subr.bf16.mxu0 0
    %91 = vmatpush1.bf16.msra.mxu0 0
    %92 = vmatprep.subr.bf16.mxu0 0
    %93 = vmatpush1.bf16.msra.mxu0 0
    %94 = vmatprep.subr.bf16.mxu0 0
    %95 = vmatpush1.bf16.msra.mxu0 0
    %96 = vmatprep.subr.bf16.mxu0 0
    %97 = vmatpush1.bf16.msra.mxu0 0
    %98 = vmatprep.subr.bf16.mxu0 0
    %99 = vmatpush1.bf16.msra.mxu0 0
    %100 = vmatprep.subr.bf16.mxu0 0
    %101 = vmatpush1.bf16.msra.mxu0 0
    %102 = vmatprep.subr.bf16.mxu0 0
    %103 = vmatpush1.bf16.msra.mxu0 0
    %104 = vmatprep.subr.bf16.mxu0 0
    %105 = vmatpush1.bf16.msra.mxu0 0
    %106 = vmatprep.subr.bf16.mxu0 0
    %107 = vmatpush1.bf16.msra.mxu0 0
    %108 = vmatprep.subr.bf16.mxu0 0
    %109 = vmatpush1.bf16.msra.mxu0 0
    %110 = vmatprep.mubr.bf16.mxu0 0
    %111 = vmatmul.mubr.bf16.gmra.mrb[0].mxu0 %v72
    %v112 = vpop.f32.mrb[0].mxu0
    %v113 = vadd.f32 %v63, %v112
    %v114 = vpop.f32.mrb[0].mxu0
    %v115 = vpop.f32.mrb[0].mxu0
    %v116 = vadd.f32 %v63, %v115
    %v117 = vpop.f32.mrb[0].mxu0
    %118 = vdwg.mxu0
    %v119 = vxor.u32 %v113, 2147483648
    %v120 = vxor.u32 %v116, 2147483648
    %v121 = vmul.f32 %v119, 1.442695
    %v122 = vpow.pop %v121
    %v123 = vmul.f32 %v120, 1.442695
    %v124 = vpow.pop %v123
    %v125 = vadd.f32 %v122, 1.0
    %v126 = vadd.f32 %v124, 1.0
    %v127 = vrcp.pop %v125
    %v128 = vmul.f32 1.0, %v127
    %v129 = vrcp.pop %v126
    %v130 = vmul.f32 1.0, %v129
    %v131 = vpack.c.bf16 %v130, %v128
    %v132 = vld [vmem:[#allocation2] sm:$0xf]
    %v133 = vld [vmem:[#allocation2 + $0x4] sm:$0xf]
    %v134 = vld [vmem:[#allocation2 + $0x8] sm:$0xf]
    %v135 = vld [vmem:[#allocation2 + $0xc] sm:$0xf]
    %v136 = vld [vmem:[#allocation2 + $0x10] sm:$0xf]
    %v137 = vld [vmem:[#allocation2 + $0x14] sm:$0xf]
    %v138 = vld [vmem:[#allocation2 + $0x18] sm:$0xf]
    %v139 = vld [vmem:[#allocation2 + $0x1c] sm:$0xf]
    %v140 = vld [vmem:[#allocation2 + $0x20] sm:$0xf]
    %v141 = vld [vmem:[#allocation2 + $0x24] sm:$0xf]
    %v142 = vld [vmem:[#allocation2 + $0x28] sm:$0xf]
    %v143 = vld [vmem:[#allocation2 + $0x2c] sm:$0xf]
    %v144 = vld [vmem:[#allocation2 + $0x30] sm:$0xf]
    %v145 = vld [vmem:[#allocation2 + $0x34] sm:$0xf]
    %v146 = vld [vmem:[#allocation2 + $0x38] sm:$0xf]
    %v147 = vld [vmem:[#allocation2 + $0x3c] sm:$0xf]
    %v148 = vld [vmem:[%s4] sm:$0x1]
    %v150 = vlaneseq
    %v151 = vshrl.u32 %v150, 7
    %v152 = vsub.s32 0, %v151
    %v153 = vrot.slane %v148, %v152
    %v171 = vunpack.c.l.b16 %v132
    %v172 = vunpack.c.l.b16 %v133
    %v173 = vunpack.c.l.b16 %v134
    %v174 = vunpack.c.l.b16 %v135
    %v175 = vunpack.c.l.b16 %v136
    %v176 = vunpack.c.l.b16 %v137
    %v177 = vunpack.c.l.b16 %v138
    %v178 = vunpack.c.l.b16 %v139
    %v179 = vunpack.c.l.b16 %v140
    %v180 = vunpack.c.l.b16 %v141
    %v181 = vunpack.c.l.b16 %v142
    %v182 = vunpack.c.l.b16 %v143
    %v183 = vunpack.c.l.b16 %v144
    %v184 = vunpack.c.l.b16 %v145
    %v185 = vunpack.c.l.b16 %v146
    %v186 = vunpack.c.l.b16 %v147
    %v187 = vpack.c.b16 %v172, %v171
    %v188 = vpack.c.b16 %v174, %v173
    %v189 = vpack.c.b16 %v176, %v175
    %v190 = vpack.c.b16 %v178, %v177
    %v191 = vpack.c.b16 %v180, %v179
    %v192 = vpack.c.b16 %v182, %v181
    %v193 = vpack.c.b16 %v184, %v183
    %v194 = vpack.c.b16 %v186, %v185
    %203 = vmatprep.subr.bf16.mxu0 0
    %204 = vmatpush1.bf16.msra.mxu0 %v187
    %205 = vmatprep.subr.bf16.mxu0 0
    %206 = vmatpush1.bf16.msra.mxu0 %v188
    %207 = vmatprep.subr.bf16.mxu0 0
    %208 = vmatpush1.bf16.msra.mxu0 %v189
    %209 = vmatprep.subr.bf16.mxu0 0
    %210 = vmatpush1.bf16.msra.mxu0 %v190
    %211 = vmatprep.subr.bf16.mxu0 0
    %212 = vmatpush1.bf16.msra.mxu0 %v191
    %213 = vmatprep.subr.bf16.mxu0 0
    %214 = vmatpush1.bf16.msra.mxu0 %v192
    %215 = vmatprep.subr.bf16.mxu0 0
    %216 = vmatpush1.bf16.msra.mxu0 %v193
    %217 = vmatprep.subr.bf16.mxu0 0
    %218 = vmatpush1.bf16.msra.mxu0 %v194
    %219 = vmatprep.subr.bf16.mxu0 0
    %220 = vmatpush1.bf16.msra.mxu0 0
    %221 = vmatprep.subr.bf16.mxu0 0
    %222 = vmatpush1.bf16.msra.mxu0 0
    %223 = vmatprep.subr.bf16.mxu0 0
    %224 = vmatpush1.bf16.msra.mxu0 0
    %225 = vmatprep.subr.bf16.mxu0 0
    %226 = vmatpush1.bf16.msra.mxu0 0
    %227 = vmatprep.subr.bf16.mxu0 0
    %228 = vmatpush1.bf16.msra.mxu0 0
    %229 = vmatprep.subr.bf16.mxu0 0
    %230 = vmatpush1.bf16.msra.mxu0 0
    %231 = vmatprep.subr.bf16.mxu0 0
    %232 = vmatpush1.bf16.msra.mxu0 0
    %233 = vmatprep.subr.bf16.mxu0 0
    %234 = vmatpush1.bf16.msra.mxu0 0
    %235 = vmatprep.mubr.bf16.mxu0 0
    %236 = vmatmul.mubr.bf16.gmra.mrb[0].mxu0 %v131
    %v237 = vpop.f32.mrb[0].mxu0
    %v238 = vadd.f32 %v153, %v237
    %v239 = vpop.f32.mrb[0].mxu0
    %v240 = vpop.f32.mrb[0].mxu0
    %v241 = vadd.f32 %v153, %v240
    %v242 = vpop.f32.mrb[0].mxu0
    %243 = vdwg.mxu0
    %v244 = vxor.u32 %v238, 2147483648
    %v245 = vxor.u32 %v241, 2147483648
    %v246 = vmul.f32 %v244, 1.442695
    %v247 = vpow.pop %v246
    %v248 = vmul.f32 %v245, 1.442695
    %v249 = vpow.pop %v248
    %v250 = vadd.f32 %v247, 1.0
    %v251 = vadd.f32 %v249, 1.0
    %v252 = vrcp.pop %v250
    %v253 = vmul.f32 1.0, %v252
    %v254 = vrcp.pop %v251
    %v255 = vmul.f32 1.0, %v254
    %v256 = vpack.c.bf16 %v255, %v253
    %v257 = vld [vmem:[#allocation4] sm:$0xf]
    %v258 = vld [vmem:[#allocation4 + $0x4] sm:$0xf]
    %v259 = vld [vmem:[#allocation4 + $0x8] sm:$0xf]
    %v260 = vld [vmem:[#allocation4 + $0xc] sm:$0xf]
    %v261 = vld [vmem:[#allocation4 + $0x10] sm:$0xf]
    %v262 = vld [vmem:[#allocation4 + $0x14] sm:$0xf]
    %v263 = vld [vmem:[#allocation4 + $0x18] sm:$0xf]
    %v264 = vld [vmem:[#allocation4 + $0x1c] sm:$0xf]
    %v265 = vld [vmem:[#allocation4 + $0x20] sm:$0xf]
    %v266 = vld [vmem:[#allocation4 + $0x24] sm:$0xf]
    %v267 = vld [vmem:[#allocation4 + $0x28] sm:$0xf]
    %v268 = vld [vmem:[#allocation4 + $0x2c] sm:$0xf]
    %v269 = vld [vmem:[#allocation4 + $0x30] sm:$0xf]
    %v270 = vld [vmem:[#allocation4 + $0x34] sm:$0xf]
    %v271 = vld [vmem:[#allocation4 + $0x38] sm:$0xf]
    %v272 = vld [vmem:[#allocation4 + $0x3c] sm:$0xf]
    %v273 = vld [vmem:[%s6] sm:$0x1]
    %v275 = vlaneseq
    %v276 = vshrl.u32 %v275, 7
    %v277 = vsub.s32 0, %v276
    %v278 = vrot.slane %v273, %v277
    %v296 = vunpack.c.l.b16 %v257
    %v297 = vunpack.c.l.b16 %v258
    %v298 = vunpack.c.l.b16 %v259
    %v299 = vunpack.c.l.b16 %v260
    %v300 = vunpack.c.l.b16 %v261
    %v301 = vunpack.c.l.b16 %v262
    %v302 = vunpack.c.l.b16 %v263
    %v303 = vunpack.c.l.b16 %v264
    %v304 = vunpack.c.l.b16 %v265
    %v305 = vunpack.c.l.b16 %v266
    %v306 = vunpack.c.l.b16 %v267
    %v307 = vunpack.c.l.b16 %v268
    %v308 = vunpack.c.l.b16 %v269
    %v309 = vunpack.c.l.b16 %v270
    %v310 = vunpack.c.l.b16 %v271
    %v311 = vunpack.c.l.b16 %v272
    %v312 = vpack.c.b16 %v297, %v296
    %v313 = vpack.c.b16 %v299, %v298
    %v314 = vpack.c.b16 %v301, %v300
    %v315 = vpack.c.b16 %v303, %v302
    %v316 = vpack.c.b16 %v305, %v304
    %v317 = vpack.c.b16 %v307, %v306
    %v318 = vpack.c.b16 %v309, %v308
    %v319 = vpack.c.b16 %v311, %v310
    %328 = vmatprep.subr.bf16.mxu0 0
    %329 = vmatpush1.bf16.msra.mxu0 %v312
    %330 = vmatprep.subr.bf16.mxu0 0
    %331 = vmatpush1.bf16.msra.mxu0 %v313
    %332 = vmatprep.subr.bf16.mxu0 0
    %333 = vmatpush1.bf16.msra.mxu0 %v314
    %334 = vmatprep.subr.bf16.mxu0 0
    %335 = vmatpush1.bf16.msra.mxu0 %v315
    %336 = vmatprep.subr.bf16.mxu0 0
    %337 = vmatpush1.bf16.msra.mxu0 %v316
    %338 = vmatprep.subr.bf16.mxu0 0
    %339 = vmatpush1.bf16.msra.mxu0 %v317
    %340 = vmatprep.subr.bf16.mxu0 0
    %341 = vmatpush1.bf16.msra.mxu0 %v318
    %342 = vmatprep.subr.bf16.mxu0 0
    %343 = vmatpush1.bf16.msra.mxu0 %v319
    %344 = vmatprep.subr.bf16.mxu0 0
    %345 = vmatpush1.bf16.msra.mxu0 0
    %346 = vmatprep.subr.bf16.mxu0 0
    %347 = vmatpush1.bf16.msra.mxu0 0
    %348 = vmatprep.subr.bf16.mxu0 0
    %349 = vmatpush1.bf16.msra.mxu0 0
    %350 = vmatprep.subr.bf16.mxu0 0
    %351 = vmatpush1.bf16.msra.mxu0 0
    %352 = vmatprep.subr.bf16.mxu0 0
    %353 = vmatpush1.bf16.msra.mxu0 0
    %354 = vmatprep.subr.bf16.mxu0 0
    %355 = vmatpush1.bf16.msra.mxu0 0
    %356 = vmatprep.subr.bf16.mxu0 0
    %357 = vmatpush1.bf16.msra.mxu0 0
    %358 = vmatprep.subr.bf16.mxu0 0
    %359 = vmatpush1.bf16.msra.mxu0 0
    %360 = vmatprep.mubr.bf16.mxu0 0
    %361 = vmatmul.mubr.bf16.gmra.mrb[0].mxu0 %v256
    %v362 = vpop.f32.mrb[0].mxu0
    %v363 = vadd.f32 %v278, %v362
    %v364 = vpop.f32.mrb[0].mxu0
    %v365 = vpop.f32.mrb[0].mxu0
    %v366 = vadd.f32 %v278, %v365
    %v367 = vpop.f32.mrb[0].mxu0
    %368 = vdwg.mxu0
    %vm369 = vcmask 31744
    %370 = vst.msk [vmem:[%s7] sm:$0xff] %vm369, %v363
    %371 = vst.msk [vmem:[%s7 + $0x8] sm:$0xff] %vm369, %v366
    // Predicated region
    $region38: #{tpu_custom_call.1} parent=1 // pred_check
      _
    $region39: #{tpu_custom_call.1} parent=1 // pred_check_branch
      %373 = sbr.rel (0) target = $region41
    $region40: #{tpu_custom_call.1} parent=1 // pred_region
      _
    $region41: #{tpu_custom_call.1} parent=1 // pred_fallthru
      _
    // Predicated region
    $region42: #{tpu_custom_call.1} parent=1 // pred_check
      _
    $region43: #{tpu_custom_call.1} parent=1 // pred_check_branch
      %375 = sbr.rel (0) target = $region45
    $region44: #{tpu_custom_call.1} parent=1 // pred_region
      _
    $region45: #{tpu_custom_call.1} parent=1 // pred_fallthru
      _
    %376 = vsyncpa [#allocation3], 1
    %377 = vsyncpa [#allocation5], 1

</llo_original>
